<compile_context>
chip_gen: v5e
topology: v5e:2x2
jax: 0.10.0
libtpu: 0.0.40
codegen_flags: <defaults>
</compile_context>

<pallas_src>
import jax
import jax.numpy as jnp
from jax.experimental import pallas as pl
from jax.experimental.pallas import tpu as pltpu


# ---------------------------------------------------------------------------
# Plain-JAX form (preferred in production: fuses into whatever consumes beta).
# ---------------------------------------------------------------------------
def beta_reference(step, gain, offset):
    return jax.nn.sigmoid(
        jnp.asarray(gain, jnp.float32)
        * (jnp.asarray(step, jnp.float32) - jnp.asarray(offset, jnp.float32))
    )


# ---------------------------------------------------------------------------
# Pallas kernel: scalar-path only (SMEM in, SMEM out; no VMEM / grid / DMA).
# ---------------------------------------------------------------------------
def _sigmoid_beta_kernel(step_ref, params_ref, out_ref):
    """beta = sigmoid(gain * (step - offset)).

    step_ref   : SMEM int32[1]   -- current training step
    params_ref : SMEM f32[2]     -- [gain, offset]
    out_ref    : SMEM f32[1]     -- scalar beta
    """
    # NOTE: int32 -> f32 cast loses integer precision for step > 2^24; fine
    # for realistic training-step counts.
    step = step_ref[0].astype(jnp.float32)
    gain = params_ref[0]
    offset = params_ref[1]

    z = gain * (step - offset)

    # Numerically stable sigmoid: only exponentiate a non-positive argument.
    neg_abs_z = jnp.where(z >= 0.0, -z, z)
    e = jnp.exp(neg_abs_z)
    beta = jnp.where(z >= 0.0, 1.0 / (1.0 + e), e / (1.0 + e))

    out_ref[0] = beta


@jax.jit
def _sigmoid_beta_pallas(step_arr, params):
    """step_arr: device int32[1]; params: device f32[2] = [gain, offset]."""
    out = pl.pallas_call(
        _sigmoid_beta_kernel,
        out_shape=jax.ShapeDtypeStruct((1,), jnp.float32),
        in_specs=[
            pl.BlockSpec(memory_space=pltpu.SMEM),  # step
            pl.BlockSpec(memory_space=pltpu.SMEM),  # [gain, offset]
        ],
        out_specs=pl.BlockSpec(memory_space=pltpu.SMEM),
    )(step_arr, params)
    return out[0]  # 0-dim scalar, like torch's as_tensor(...).sigmoid()


class SigmoidBetaScheduler:
    """JAX equivalent of the torch SigmoidBetaScheduler module.

    gain/offset are uploaded to device ONCE at construction; forward() then
    only consumes device-resident scalars, so repeated calls incur no
    host->device transfers and no recompiles.
    """

    def __init__(self, gain: float, offset: float) -> None:
        self._params = jnp.array([gain, offset], dtype=jnp.float32)  # device-resident

    def forward(self, step, acc, communication_loss):
        # SigmoidBetaScheduler ignores acc / communication_loss; they are
        # accepted only for signature fidelity and are NOT sent to the kernel.
        del acc, communication_loss
        if isinstance(step, jax.Array):
            step_arr = step.astype(jnp.int32).reshape((1,))
        else:
            step_arr = jnp.asarray(step, dtype=jnp.int32).reshape((1,))
        return _sigmoid_beta_pallas(step_arr, self._params)

    __call__ = forward


if __name__ == "__main__":
    key = jax.random.PRNGKey(0)
    k_acc, k_loss = jax.random.split(key)

    # Small, deterministic example inputs consistent with the module's forward.
    batch = 8
    gain = 0.01
    offset = 1000.0
    acc = jax.random.uniform(k_acc, (batch,), dtype=jnp.float32)
    communication_loss = jax.random.normal(k_loss, (batch,), dtype=jnp.float32)

    scheduler = SigmoidBetaScheduler(gain=gain, offset=offset)

    # Device-resident step counter (as recommended: no per-step host scalars).
    step_dev = jnp.asarray(1500, dtype=jnp.int32)

    beta = scheduler(step_dev, acc, communication_loss)
    beta = jax.block_until_ready(beta)

    expected = beta_reference(1500, gain, offset)
    assert beta.shape == () and beta.dtype == jnp.float32
    assert jnp.allclose(beta, expected, rtol=1e-6, atol=1e-6)

    # Second call with the on-device-incremented step: same compiled kernel,
    # no host transfer of the step value.
    step_dev = step_dev + 500
    beta_b = jax.block_until_ready(scheduler(step_dev, acc, communication_loss))
    assert jnp.allclose(beta_b, beta_reference(2000, gain, offset), rtol=1e-6, atol=1e-6)

    # Different hyperparameters + very negative z: no recompile dependence on
    # (gain, offset) values, and the stable-sigmoid path stays finite.
    scheduler2 = SigmoidBetaScheduler(gain=1.0, offset=10000.0)
    beta2 = jax.block_until_ready(
        scheduler2(jnp.asarray(0, jnp.int32), acc, communication_loss)
    )
    assert jnp.allclose(beta2, beta_reference(0, 1.0, 10000.0), rtol=1e-6, atol=1e-6)

    print("KERNEL_OK")
</pallas_src>

<mosaic_0001>
module attributes {stable_mosaic.version = 11 : i64} {
  func.func @_sigmoid_beta_kernel(%arg0: memref<1xi32, #tpu.memory_space<smem>>, %arg1: memref<2xf32, #tpu.memory_space<smem>>, %arg2: memref<1xf32, #tpu.memory_space<smem>>) attributes {dimension_semantics = [], scalar_prefetch = 0 : i64, scratch_operands = 0 : i64, tpu.core_type = #tpu.core_type<tc>} {
    %c0 = arith.constant 0 : index
    %0 = memref.load %arg0[%c0] : memref<1xi32, #tpu.memory_space<smem>>
    %1 = arith.sitofp %0 : i32 to f32
    %c0_0 = arith.constant 0 : index
    %2 = memref.load %arg1[%c0_0] : memref<2xf32, #tpu.memory_space<smem>>
    %c1 = arith.constant 1 : index
    %3 = memref.load %arg1[%c1] : memref<2xf32, #tpu.memory_space<smem>>
    %4 = arith.subf %1, %3 : f32
    %5 = arith.mulf %2, %4 : f32
    %cst = arith.constant 0.000000e+00 : f32
    %6 = arith.cmpf oge, %5, %cst : f32
    %cst_1 = arith.constant 0.000000e+00 : f32
    %7 = arith.subf %cst_1, %5 : f32
    %8 = arith.select %6, %7, %5 : f32
    %9 = math.exp %8 : f32
    %cst_2 = arith.constant 0.000000e+00 : f32
    %10 = arith.cmpf oge, %5, %cst_2 : f32
    %cst_3 = arith.constant 1.000000e+00 : f32
    %11 = arith.addf %cst_3, %9 : f32
    %cst_4 = arith.constant 1.000000e+00 : f32
    %12 = arith.divf %cst_4, %11 : f32
    %cst_5 = arith.constant 1.000000e+00 : f32
    %13 = arith.addf %cst_5, %9 : f32
    %14 = arith.divf %9, %13 : f32
    %15 = arith.select %10, %12, %14 : f32
    %c0_6 = arith.constant 0 : index
    %16 = memref.load %arg2[%c0_6] : memref<1xf32, #tpu.memory_space<smem>>
    memref.store %15, %arg2[%c0_6] : memref<1xf32, #tpu.memory_space<smem>>
    return
  }
}

</mosaic_0001>

<llo_original>
// kernel: _sigmoid_beta_pallas.1
$region0: #{_sigmoid_beta_pallas.1}
  #allocation0 [shape = 'u32[]', space=smem, size = 0x4, offset = 0x4, fixed_abs, tag = 'smem constant byte address 0x4 - core index']
  #allocation1 [shape = 'u32[72,128]{1,0:T(1,128)}', space=vmem, size = 0x9000, scoped, tag = 'internal scratch']
  #allocation2 [shape = 's32[1]{0:T(128)S(6)}', space=smem, size = 0x200, scoped, tag = 'scoped memory for _sigmoid_beta_pallas.1']
  %s0 = inlined_call_operand.<no memory space> [shape: s32[1], index: 0, kind: input, shape index: {}]
  %s1 = inlined_call_operand.vmem [shape: f32[2], index: 1, kind: input, shape index: {}]
  %s2 = inlined_call_operand.hbm [shape: f32[1], index: 2, kind: output, shape index: {}]
  %s3 = sld [smem:[#allocation0]]
  $region22: #{_sigmoid_beta_pallas.1} parent=0
    _
  %s5 = ssub.s32 1, %s3
  %s6 = scalar_select 0, %s5, %s3
  %7 = sst [smem:[#allocation2]] %s0
  $region1: #{_sigmoid_beta_pallas.1} parent=0
    #allocation3 [shape = 'u8[512]{0}', space=smem, size = 0x200, scoped, tag = 'input window, operand 1, single buffered']
    #allocation4 [shape = 's32[1]{0}', space=sflag, size = 0x4, scoped, tag = 'scoped memory for _sigmoid_beta_pallas.1']
    #allocation5 [shape = 's32[1]{0}', space=sflag, size = 0x4, scoped, tag = 'scoped memory for _sigmoid_beta_pallas.1']
    #allocation6 [shape = 'u8[512]{0}', space=smem, size = 0x200, scoped, tag = 'output window, operand 0, single buffered']
    %8 = vsyncpa [#allocation5], 0
    %9 = vsyncpa [#allocation4], 0
    // Predicated region
    $region2: #{_sigmoid_beta_pallas.1} parent=1 // pred_check
      _
    $region3: #{_sigmoid_beta_pallas.1} parent=1 // pred_check_branch
      %11 = sbr.rel (0) target = $region5
    $region4: #{_sigmoid_beta_pallas.1} parent=1 // pred_region
      _
    $region5: #{_sigmoid_beta_pallas.1} parent=1 // pred_fallthru
      _
    // Predicated region
    $region6: #{_sigmoid_beta_pallas.1} parent=1 // pred_check
      _
    $region7: #{_sigmoid_beta_pallas.1} parent=1 // pred_check_branch
      %13 = sbr.rel (0) target = $region9
    $region8: #{_sigmoid_beta_pallas.1} parent=1 // pred_region
      %15 = vsyncadd [#allocation5], 0
      %s17 = sshll.u32 %s1, 4
      %s18 = int_to_ptr.vmem [resolvable:$true] %s17
      %20 = dma.vmem_to_smem %s18, 16, [#allocation3], [#allocation5]
    $region9: #{_sigmoid_beta_pallas.1} parent=1 // pred_fallthru
      _
    // Predicated region
    $region10: #{_sigmoid_beta_pallas.1} parent=1 // pred_check
      _
    $region11: #{_sigmoid_beta_pallas.1} parent=1 // pred_check_branch
      %22 = sbr.rel (0) target = $region13
    $region12: #{_sigmoid_beta_pallas.1} parent=1 // pred_region
      %24 = dma.done [#allocation5], 16
    $region13: #{_sigmoid_beta_pallas.1} parent=1 // pred_fallthru
      _
    %25 = sfence
    %s26 = sld [smem:[#allocation2]]
    %s27 = scvt.s32.f32 %s26
    %s28 = sld [smem:[#allocation3]]
    %s29 = sld [smem:[#allocation3 + $0x1]]
    %s30 = ssub.f32 %s27, %s29
    %s31 = smul.f32 %s28, %s30
    %p32 = scmp.ge.f32.partialorder %s31, 0.0
    %s33 = ssub.f32 0.0, %s31
    %s34 = scalar_select %p32, %s33, %s31
    %v35 = vstv %s34
    %v36 = vmul.f32 %v35, 1.442695
    %v37 = vpow.pop %v36
    %s38 = vtos %v37
    %s39 = sadd.f32 %s38, 1.0
    %v40 = vstv %s39
    %v41 = vrcp.pop %v40
    %v42 = vmul.f32 %v40, %v41
    %v43 = vsub.f32 1.0, %v42
    %v44 = vmul.f32 %v41, %v43
    %v45 = vadd.f32 %v41, %v44
    %vm46 = vweird.f32 %v40
    %vm47 = vweird.f32 %v41
    %vm48 = vmor %vm46, %vm47
    %v49 = vsel %vm48, %v41, %v45
    %v50 = vand.u32 2147483647, %v40
    %vm51 = vcmp.eq.f32.partialorder %v50, 8.507059e+37
    %v52 = vand.u32 %v40, 2147483648
    %v53 = vor.u32 1.1754944e-38, %v52
    %v54 = vsel %vm51, %v53, %v49
    %s55 = vtos %v54
    %v56 = vstv %s39
    %v57 = vrcp.pop %v56
    %v58 = vmul.f32 %v56, %v57
    %v59 = vsub.f32 1.0, %v58
    %v60 = vmul.f32 %v57, %v59
    %v61 = vadd.f32 %v57, %v60
    %vm62 = vweird.f32 %v56
    %vm63 = vweird.f32 %v57
    %vm64 = vmor %vm62, %vm63
    %v65 = vsel %vm64, %v57, %v61
    %v66 = vand.u32 2147483647, %v56
    %vm67 = vcmp.eq.f32.partialorder %v66, 8.507059e+37
    %v68 = vand.u32 %v56, 2147483648
    %v69 = vor.u32 1.1754944e-38, %v68
    %v70 = vsel %vm67, %v69, %v65
    %s71 = vtos %v70
    %s72 = smul.f32 %s38, %s71
    %s73 = scalar_select %p32, %s55, %s72
    %s74 = scalar_lea.smem [#allocation6], 0
    %75 = sst [smem:[%s74]] %s73
    // Predicated region
    $region14: #{_sigmoid_beta_pallas.1} parent=1 // pred_check
      _
    $region15: #{_sigmoid_beta_pallas.1} parent=1 // pred_check_branch
      %77 = sbr.rel (0) target = $region17
    $region16: #{_sigmoid_beta_pallas.1} parent=1 // pred_region
      %79 = vsyncadd [#allocation4], 0
      %s81 = sshll.u32 %s2, 4
      %s82 = int_to_ptr.hbm [resolvable:$true] %s81
      %84 = dma.smem_to_hbm [#allocation6], 16, %s82, [#allocation4]
    $region17: #{_sigmoid_beta_pallas.1} parent=1 // pred_fallthru
      _
    // Predicated region
    $region18: #{_sigmoid_beta_pallas.1} parent=1 // pred_check
      _
    $region19: #{_sigmoid_beta_pallas.1} parent=1 // pred_check_branch
      %86 = sbr.rel (0) target = $region21
    $region20: #{_sigmoid_beta_pallas.1} parent=1 // pred_region
      %88 = dma.done [#allocation4], 16
    $region21: #{_sigmoid_beta_pallas.1} parent=1 // pred_fallthru
      _
    %89 = sfence
    %90 = vsyncpa [#allocation4], 1
    %91 = vsyncpa [#allocation5], 1

</llo_original>
